<compile_context>
chip_gen: v6e
topology: v6e:2x2x1
jax: 0.10.0
libtpu: 0.0.40
codegen_flags: <defaults>
</compile_context>

<pallas_src>
import math

import jax
import jax.numpy as jnp
from jax.experimental import pallas as pl
from jax.experimental.pallas import tpu as pltpu


_LOG_2PI = math.log(2.0 * math.pi)


def _make_actor_kernel(action_range, state_dim, hidden, action_dim):
    S, H, A = state_dim, hidden, action_dim

    def actor_kernel(x_ref, w1_ref, w2h_ref, bias_ref, out_ref):
        # Packed input: [state | eps]  -> (TB, S + A)
        xin = x_ref[...]
        state = xin[:, :S]
        eps = xin[:, S:S + A]

        # Packed fc2 + fused head weights: (H, H + 2A)
        w2h = w2h_ref[...]
        w2 = w2h[:, :H]
        wh = w2h[:, H:H + 2 * A]

        # Packed biases: [b1 | b2 | bmu | bsig] -> (1, 2H + 2A)
        bias = bias_ref[...]
        b1 = bias[:, :H]
        b2 = bias[:, H:2 * H]
        bh = bias[:, 2 * H:2 * H + 2 * A]

        # fc1 + relu
        a = jnp.dot(state, w1_ref[...], preferred_element_type=jnp.float32) + b1
        a = jnp.maximum(a, 0.0)
        # fc2 + relu
        a = jnp.dot(a, w2, preferred_element_type=jnp.float32) + b2
        a = jnp.maximum(a, 0.0)

        # Fused mu / sigma head: one MXU call instead of two.
        h = jnp.dot(a, wh, preferred_element_type=jnp.float32) + bh
        mu = h[:, :A]
        sig_pre = h[:, A:2 * A]
        sigma = jnp.logaddexp(sig_pre, 0.0)        # softplus
        log_sigma = jnp.log(sigma)

        # dist.rsample(): act = mu + sigma * eps
        act = mu + sigma * eps

        # Normal entropy: 0.5 + 0.5*log(2*pi) + log(sigma)    (per-dimension)
        ent = 0.5 + 0.5 * _LOG_2PI + log_sigma
        # Normal log_prob at act == mu + sigma*eps  ==  -0.5*eps^2 - log_sigma - 0.5*log(2pi)
        logp = -0.5 * eps * eps - log_sigma - 0.5 * _LOG_2PI

        # tanh squash + change-of-variables correction
        act_tanh = jnp.tanh(act)
        act_out = act_tanh * action_range
        logp = logp - jnp.log(action_range * (1.0 - act_tanh * act_tanh) + 1e-6)
        logp_sum = jnp.sum(logp, axis=1, keepdims=True)          # (TB, 1)

        # Single lane-dense writeback: [act | entropy | logp_sum]
        out_ref[...] = jnp.concatenate([act_out, ent, logp_sum], axis=1)

    return actor_kernel


def actor_forward(state, eps, params, action_range, *, block_b=512):
    """state: (B, state_dim) f32; eps: (B, action_dim) f32 standard normals.
    Returns (act (B,A), act_log_prob (B,1), act_entropy (B,A))."""
    B, S = state.shape
    A = eps.shape[1]
    H = params["w1"].shape[1]

    # Host-side packing: 4 HBM buffers instead of 10.
    x_in = jnp.concatenate([state, eps], axis=1)                                   # (B, S+A)
    w1 = params["w1"]                                                              # (S, H)
    w2h = jnp.concatenate([params["w2"], params["wmu"], params["wsig"]], axis=1)   # (H, H+2A)
    bias = jnp.concatenate(
        [params["b1"], params["b2"], params["bmu"], params["bsig"]], axis=1)       # (1, 2H+2A)

    # Batch tile: multiple of 8 (or the full batch for small B).
    tb = min(block_b, B)
    if B % tb != 0 or tb % 8 != 0:
        tb = B
    grid = (B // tb,)

    out_w = 2 * A + 1
    kernel = _make_actor_kernel(float(action_range), S, H, A)

    packed = pl.pallas_call(
        kernel,
        out_shape=jax.ShapeDtypeStruct((B, out_w), jnp.float32),
        grid=grid,
        in_specs=[
            pl.BlockSpec((tb, S + A), lambda i: (i, 0)),        # streamed per-tile
            pl.BlockSpec((S, H), lambda i: (0, 0)),             # grid-invariant weights
            pl.BlockSpec((H, H + 2 * A), lambda i: (0, 0)),
            pl.BlockSpec((1, 2 * H + 2 * A), lambda i: (0, 0)),
        ],
        out_specs=pl.BlockSpec((tb, out_w), lambda i: (i, 0)),
        compiler_params=pltpu.CompilerParams(
            dimension_semantics=("parallel",),                  # megacore sharding on v7x
        ),
    )(x_in, w1, w2h, bias)

    act = packed[:, :A]
    ent = packed[:, A:2 * A]
    logp = packed[:, 2 * A:2 * A + 1]
    return act, logp, ent


def init_params(key, state_dim, action_dim, hidden=16):
    """Deterministic synthetic init (uniform, Linear-like fan-in scaling).
    Weights stored as (in, out); biases as (1, out)."""
    ks = jax.random.split(key, 8)

    def lin(kw, kb, fan_in, fan_out):
        bound = 1.0 / math.sqrt(fan_in)
        w = jax.random.uniform(kw, (fan_in, fan_out), jnp.float32, -bound, bound)
        b = jax.random.uniform(kb, (1, fan_out), jnp.float32, -bound, bound)
        return w, b

    w1, b1 = lin(ks[0], ks[1], state_dim, hidden)
    w2, b2 = lin(ks[2], ks[3], hidden, hidden)
    wmu, bmu = lin(ks[4], ks[5], hidden, action_dim)
    wsig, bsig = lin(ks[6], ks[7], hidden, action_dim)
    return dict(w1=w1, b1=b1, w2=w2, b2=b2,
                wmu=wmu, bmu=bmu, wsig=wsig, bsig=bsig)


def _reference_forward(state, eps, params, action_range):
    """Pure-JAX reference of the PyTorch Actor.forward (action=None path)."""
    a = jnp.maximum(state @ params["w1"] + params["b1"], 0.0)
    a = jnp.maximum(a @ params["w2"] + params["b2"], 0.0)
    mu = a @ params["wmu"] + params["bmu"]
    sigma = jnp.logaddexp(a @ params["wsig"] + params["bsig"], 0.0)
    act = mu + sigma * eps
    ent = 0.5 + 0.5 * _LOG_2PI + jnp.log(sigma)
    logp = -((act - mu) ** 2) / (2.0 * sigma * sigma) - jnp.log(sigma) - 0.5 * _LOG_2PI
    act_tanh = jnp.tanh(act)
    act_out = act_tanh * action_range
    logp = logp - jnp.log(action_range * (1.0 - act_tanh ** 2) + 1e-6)
    return act_out, jnp.sum(logp, axis=1, keepdims=True), ent


if __name__ == "__main__":
    key = jax.random.PRNGKey(0)
    k_param, k_state, k_eps = jax.random.split(key, 3)

    batch, state_dim, action_dim = 8, 8, 4
    action_range = 2.0

    params = init_params(k_param, state_dim, action_dim)
    state = jax.random.normal(k_state, (batch, state_dim), dtype=jnp.float32)
    # rsample noise (dist.rsample() == mu + sigma * eps), drawn deterministically.
    eps = jax.random.normal(k_eps, (batch, action_dim), dtype=jnp.float32)

    act, act_log_prob, act_entropy = actor_forward(state, eps, params, action_range)
    jax.block_until_ready((act, act_log_prob, act_entropy))

    assert act.shape == (batch, action_dim)
    assert act_log_prob.shape == (batch, 1)
    assert act_entropy.shape == (batch, action_dim)

    # Correctness check against a pure-JAX reference of the PyTorch forward.
    ref_act, ref_logp, ref_ent = _reference_forward(state, eps, params, action_range)
    assert jnp.allclose(act, ref_act, atol=1e-4, rtol=1e-4)
    assert jnp.allclose(act_log_prob, ref_logp, atol=1e-4, rtol=1e-4)
    assert jnp.allclose(act_entropy, ref_ent, atol=1e-4, rtol=1e-4)

    print("KERNEL_OK")
</pallas_src>

<mosaic_0001>
module attributes {stable_mosaic.version = 11 : i64} {
  func.func @actor_kernel(%arg0: i32, %arg1: memref<8x12xf32, #tpu.memory_space<vmem>>, %arg2: memref<8x16xf32, #tpu.memory_space<vmem>>, %arg3: memref<16x24xf32, #tpu.memory_space<vmem>>, %arg4: memref<1x40xf32, #tpu.memory_space<vmem>>, %arg5: memref<8x9xf32, #tpu.memory_space<vmem>>) attributes {dimension_semantics = [#tpu.dimension_semantics<parallel>], iteration_bounds = array<i64: 1>, scalar_prefetch = 0 : i64, scratch_operands = 0 : i64, tpu.core_type = #tpu.core_type<tc>, window_params = [{transform_indices = @transform_0, window_bounds = array<i64: 8, 12>}, {pipeline_mode = #tpu.pipeline_mode<synchronous>, transform_indices = @transform_1, window_bounds = array<i64: 8, 16>}, {pipeline_mode = #tpu.pipeline_mode<synchronous>, transform_indices = @transform_2, window_bounds = array<i64: 16, 24>}, {pipeline_mode = #tpu.pipeline_mode<synchronous>, transform_indices = @transform_3, window_bounds = array<i64: 1, 40>}, {transform_indices = @transform_4, window_bounds = array<i64: 8, 9>}]} {
    %c0 = arith.constant 0 : index
    %c0_0 = arith.constant 0 : index
    %0 = vector.load %arg1[%c0, %c0_0] : memref<8x12xf32, #tpu.memory_space<vmem>>, vector<8x12xf32>
    %1 = vector.extract_strided_slice %0 {offsets = [0, 0], sizes = [8, 8], strides = [1, 1]} : vector<8x12xf32> to vector<8x8xf32>
    %2 = vector.extract_strided_slice %0 {offsets = [0, 8], sizes = [8, 4], strides = [1, 1]} : vector<8x12xf32> to vector<8x4xf32>
    %c0_1 = arith.constant 0 : index
    %c0_2 = arith.constant 0 : index
    %3 = vector.load %arg3[%c0_1, %c0_2] : memref<16x24xf32, #tpu.memory_space<vmem>>, vector<16x24xf32>
    %4 = vector.extract_strided_slice %3 {offsets = [0, 0], sizes = [16, 16], strides = [1, 1]} : vector<16x24xf32> to vector<16x16xf32>
    %5 = vector.extract_strided_slice %3 {offsets = [0, 16], sizes = [16, 8], strides = [1, 1]} : vector<16x24xf32> to vector<16x8xf32>
    %c0_3 = arith.constant 0 : index
    %c0_4 = arith.constant 0 : index
    %6 = vector.load %arg4[%c0_3, %c0_4] : memref<1x40xf32, #tpu.memory_space<vmem>>, vector<1x40xf32>
    %7 = vector.extract_strided_slice %6 {offsets = [0, 0], sizes = [1, 16], strides = [1, 1]} : vector<1x40xf32> to vector<1x16xf32>
    %8 = vector.extract_strided_slice %6 {offsets = [0, 16], sizes = [1, 16], strides = [1, 1]} : vector<1x40xf32> to vector<1x16xf32>
    %9 = vector.extract_strided_slice %6 {offsets = [0, 32], sizes = [1, 8], strides = [1, 1]} : vector<1x40xf32> to vector<1x8xf32>
    %c0_5 = arith.constant 0 : index
    %c0_6 = arith.constant 0 : index
    %10 = vector.load %arg2[%c0_5, %c0_6] : memref<8x16xf32, #tpu.memory_space<vmem>>, vector<8x16xf32>
    %cst = arith.constant dense<0.000000e+00> : vector<8x16xf32>
    %11 = tpu.matmul %1, %10, %cst {dimension_numbers = #tpu.dot_dimension_numbers<[1], [0], [0], [1], [0, 0, 1, 1], [], []>} : vector<8x8xf32>, vector<8x16xf32>, vector<8x16xf32> -> vector<8x16xf32>
    %12 = vector.broadcast %7 : vector<1x16xf32> to vector<8x16xf32>
    %13 = arith.addf %11, %12 : vector<8x16xf32>
    %cst_7 = arith.constant 0.000000e+00 : f32
    %14 = vector.broadcast %cst_7 : f32 to vector<8x16xf32>
    %15 = arith.maximumf %13, %14 : vector<8x16xf32>
    %cst_8 = arith.constant dense<0.000000e+00> : vector<8x16xf32>
    %16 = tpu.matmul %15, %4, %cst_8 {dimension_numbers = #tpu.dot_dimension_numbers<[1], [0], [0], [1], [0, 0, 1, 1], [], []>} : vector<8x16xf32>, vector<16x16xf32>, vector<8x16xf32> -> vector<8x16xf32>
    %17 = vector.broadcast %8 : vector<1x16xf32> to vector<8x16xf32>
    %18 = arith.addf %16, %17 : vector<8x16xf32>
    %cst_9 = arith.constant 0.000000e+00 : f32
    %19 = vector.broadcast %cst_9 : f32 to vector<8x16xf32>
    %20 = arith.maximumf %18, %19 : vector<8x16xf32>
    %cst_10 = arith.constant dense<0.000000e+00> : vector<8x8xf32>
    %21 = tpu.matmul %20, %5, %cst_10 {dimension_numbers = #tpu.dot_dimension_numbers<[1], [0], [0], [1], [0, 0, 1, 1], [], []>} : vector<8x16xf32>, vector<16x8xf32>, vector<8x8xf32> -> vector<8x8xf32>
    %22 = vector.broadcast %9 : vector<1x8xf32> to vector<8x8xf32>
    %23 = arith.addf %21, %22 : vector<8x8xf32>
    %24 = vector.extract_strided_slice %23 {offsets = [0, 0], sizes = [8, 4], strides = [1, 1]} : vector<8x8xf32> to vector<8x4xf32>
    %25 = vector.extract_strided_slice %23 {offsets = [0, 4], sizes = [8, 4], strides = [1, 1]} : vector<8x8xf32> to vector<8x4xf32>
    %cst_11 = arith.constant 0.000000e+00 : f32
    %26 = vector.broadcast %cst_11 : f32 to vector<8x4xf32>
    %27 = arith.maximumf %25, %26 : vector<8x4xf32>
    %28 = vector.broadcast %cst_11 : f32 to vector<8x4xf32>
    %29 = arith.subf %25, %28 : vector<8x4xf32>
    %30 = arith.cmpf one, %29, %29 : vector<8x4xf32>
    %31 = vector.broadcast %cst_11 : f32 to vector<8x4xf32>
    %32 = arith.addf %25, %31 : vector<8x4xf32>
    %33 = math.absf %29 : vector<8x4xf32>
    %cst_12 = arith.constant 0.000000e+00 : f32
    %34 = vector.broadcast %cst_12 : f32 to vector<8x4xf32>
    %35 = arith.subf %34, %33 : vector<8x4xf32>
    %36 = math.exp %35 : vector<8x4xf32>
    %37 = math.log1p %36 : vector<8x4xf32>
    %38 = arith.addf %27, %37 : vector<8x4xf32>
    %39 = arith.select %30, %32, %38 : vector<8x4xi1>, vector<8x4xf32>
    %40 = math.log %39 : vector<8x4xf32>
    %41 = arith.mulf %39, %2 : vector<8x4xf32>
    %42 = arith.addf %24, %41 : vector<8x4xf32>
    %cst_13 = arith.constant 1.41893852 : f32
    %43 = vector.broadcast %cst_13 : f32 to vector<8x4xf32>
    %44 = arith.addf %43, %40 : vector<8x4xf32>
    %cst_14 = arith.constant -5.000000e-01 : f32
    %45 = vector.broadcast %cst_14 : f32 to vector<8x4xf32>
    %46 = arith.mulf %45, %2 : vector<8x4xf32>
    %47 = arith.mulf %46, %2 : vector<8x4xf32>
    %48 = arith.subf %47, %40 : vector<8x4xf32>
    %cst_15 = arith.constant 0.918938517 : f32
    %49 = vector.broadcast %cst_15 : f32 to vector<8x4xf32>
    %50 = arith.subf %48, %49 : vector<8x4xf32>
    %51 = math.tanh %42 : vector<8x4xf32>
    %cst_16 = arith.constant 2.000000e+00 : f32
    %52 = vector.broadcast %cst_16 : f32 to vector<8x4xf32>
    %53 = arith.mulf %51, %52 : vector<8x4xf32>
    %54 = arith.mulf %51, %51 : vector<8x4xf32>
    %cst_17 = arith.constant 1.000000e+00 : f32
    %55 = vector.broadcast %cst_17 : f32 to vector<8x4xf32>
    %56 = arith.subf %55, %54 : vector<8x4xf32>
    %cst_18 = arith.constant 2.000000e+00 : f32
    %57 = vector.broadcast %cst_18 : f32 to vector<8x4xf32>
    %58 = arith.mulf %57, %56 : vector<8x4xf32>
    %cst_19 = arith.constant 9.99999997E-7 : f32
    %59 = vector.broadcast %cst_19 : f32 to vector<8x4xf32>
    %60 = arith.addf %58, %59 : vector<8x4xf32>
    %61 = math.log %60 : vector<8x4xf32>
    %62 = arith.subf %50, %61 : vector<8x4xf32>
    %cst_20 = arith.constant dense<0.000000e+00> : vector<8xf32>
    %63 = vector.multi_reduction <add>, %62, %cst_20 [1] : vector<8x4xf32> to vector<8xf32>
    %64 = vector.shape_cast %63 : vector<8xf32> to vector<8x1xf32>
    %65 = tpu.concatenate %53, %44, %64 in 1 : vector<8x4xf32>, vector<8x4xf32>, vector<8x1xf32> -> vector<8x9xf32>
    %c0_21 = arith.constant 0 : index
    %c0_22 = arith.constant 0 : index
    %66 = vector.load %arg5[%c0_21, %c0_22] : memref<8x9xf32, #tpu.memory_space<vmem>>, vector<8x9xf32>
    tpu.vector_store %arg5[%c0_21, %c0_22], %65 {strides = array<i32>} : memref<8x9xf32, #tpu.memory_space<vmem>>, vector<8x9xf32>,
    return
  }
  func.func @transform_0(%arg0: i32) -> (i32, i32) {
    %c0_i32 = arith.constant 0 : i32
    %c0_i32_0 = arith.constant 0 : i32
    return %arg0, %c0_i32 : i32, i32
  }
  func.func @transform_1(%arg0: i32) -> (i32, i32) {
    %c0_i32 = arith.constant 0 : i32
    %c0_i32_0 = arith.constant 0 : i32
    %c0_i32_1 = arith.constant 0 : i32
    return %c0_i32, %c0_i32_0 : i32, i32
  }
  func.func @transform_2(%arg0: i32) -> (i32, i32) {
    %c0_i32 = arith.constant 0 : i32
    %c0_i32_0 = arith.constant 0 : i32
    %c0_i32_1 = arith.constant 0 : i32
    return %c0_i32, %c0_i32_0 : i32, i32
  }
  func.func @transform_3(%arg0: i32) -> (i32, i32) {
    %c0_i32 = arith.constant 0 : i32
    %c0_i32_0 = arith.constant 0 : i32
    %c0_i32_1 = arith.constant 0 : i32
    return %c0_i32, %c0_i32_0 : i32, i32
  }
  func.func @transform_4(%arg0: i32) -> (i32, i32) {
    %c0_i32 = arith.constant 0 : i32
    %c0_i32_0 = arith.constant 0 : i32
    return %arg0, %c0_i32 : i32, i32
  }
}

</mosaic_0001>

<llo_original>
// kernel: tpu_custom_call.1
$region0: #{tpu_custom_call.1}
  #allocation0 [shape = 'u32[]', space=smem, size = 0x4, offset = 0x4, fixed_abs, tag = 'smem constant byte address 0x4 - core index']
  #allocation1 [shape = 'u32[144,128]{1,0:T(1,128)}', space=vmem, size = 0x12000, scoped, tag = 'internal scratch']
  %s0 = inlined_call_operand.hbm [shape: f32[8,12], index: 0, kind: input, shape index: {}]
  %s1 = inlined_call_operand.hbm [shape: f32[8,16], index: 1, kind: input, shape index: {}]
  %s2 = inlined_call_operand.hbm [shape: f32[16,24], index: 2, kind: input, shape index: {}]
  %s3 = inlined_call_operand.vmem [shape: f32[1,40], index: 3, kind: input, shape index: {}]
  %s4 = inlined_call_operand.hbm [shape: f32[8,9], index: 4, kind: output, shape index: {}]
  %s5 = sld [smem:[#allocation0]]
  $region38: #{tpu_custom_call.1} parent=0
    _
  %s7 = ssub.s32 1, %s5
  %s8 = scalar_select 0, %s7, %s5
  $region1: #{tpu_custom_call.1} parent=0
    #allocation2 [shape = 'u8[4096]{0}', space=vmem, size = 0x1000, scoped, tag = 'input window, operand 0, single buffered']
    #allocation3 [shape = 's32[1]{0}', space=sflag, size = 0x4, scoped, tag = 'scoped memory for tpu_custom_call.1']
    #allocation4 [shape = 's32[1]{0}', space=sflag, size = 0x4, scoped, tag = 'scoped memory for tpu_custom_call.1']
    #allocation5 [shape = 'u8[4096]{0}', space=vmem, size = 0x1000, scoped, tag = 'input window, operand 1, single buffered']
    #allocation6 [shape = 's32[1]{0}', space=sflag, size = 0x4, scoped, tag = 'scoped memory for tpu_custom_call.1']
    #allocation7 [shape = 'u8[8192]{0}', space=vmem, size = 0x2000, scoped, tag = 'input window, operand 2, single buffered']
    #allocation8 [shape = 'u8[4096]{0}', space=vmem, size = 0x1000, scoped, tag = 'output window, operand 0, single buffered']
    %9 = vsyncpa [#allocation3], 0
    %10 = vsyncpa [#allocation6], 0
    %11 = vsyncpa [#allocation4], 0
    // Predicated region
    $region2: #{tpu_custom_call.1} parent=1 // pred_check
      _
    $region3: #{tpu_custom_call.1} parent=1 // pred_check_branch
      %13 = sbr.rel (0) target = $region5
    $region4: #{tpu_custom_call.1} parent=1 // pred_region
      %s15 = ssub.s32 128, 128
      %16 = vsyncadd [#allocation3], %s15
      %s18 = sshll.u32 [#allocation2], 4
      %s19 = int_to_ptr.vmem [resolvable:$true] %s18
      %21 = dma.hbm_to_vmem [thread:$0]  %s0, 128, %s19, [#allocation3]
    $region5: #{tpu_custom_call.1} parent=1 // pred_fallthru
      _
    // Predicated region
    $region6: #{tpu_custom_call.1} parent=1 // pred_check
      _
    $region7: #{tpu_custom_call.1} parent=1 // pred_check_branch
      %23 = sbr.rel (0) target = $region9
    $region8: #{tpu_custom_call.1} parent=1 // pred_region
      %s25 = ssub.s32 128, 128
      %26 = vsyncadd [#allocation6], %s25
      %s28 = sshll.u32 [#allocation5], 4
      %s29 = int_to_ptr.vmem [resolvable:$true] %s28
      %31 = dma.hbm_to_vmem [thread:$0]  %s1, 128, %s29, [#allocation6]
    $region9: #{tpu_custom_call.1} parent=1 // pred_fallthru
      _
    // Predicated region
    $region10: #{tpu_custom_call.1} parent=1 // pred_check
      _
    $region11: #{tpu_custom_call.1} parent=1 // pred_check_branch
      %33 = sbr.rel (0) target = $region13
    $region12: #{tpu_custom_call.1} parent=1 // pred_region
      %s35 = ssub.s32 256, 256
      %36 = vsyncadd [#allocation6], %s35
      %s37 = sshll.u32 [#allocation7], 4
      %s38 = int_to_ptr.vmem [resolvable:$true] %s37
      %43 = dma.hbm_to_vmem [thread:$0]  %s2, 256, %s38, [#allocation6], 128, 128, 8
    $region13: #{tpu_custom_call.1} parent=1 // pred_fallthru
      _
    // Predicated region
    $region14: #{tpu_custom_call.1} parent=1 // pred_check
      _
    $region15: #{tpu_custom_call.1} parent=1 // pred_check_branch
      %45 = sbr.rel (0) target = $region17
    $region16: #{tpu_custom_call.1} parent=1 // pred_region
      _
    $region17: #{tpu_custom_call.1} parent=1 // pred_fallthru
      _
    // Predicated region
    $region18: #{tpu_custom_call.1} parent=1 // pred_check
      _
    $region19: #{tpu_custom_call.1} parent=1 // pred_check_branch
      %47 = sbr.rel (0) target = $region21
    $region20: #{tpu_custom_call.1} parent=1 // pred_region
      %48 = dma.done [#allocation3], 128
    $region21: #{tpu_custom_call.1} parent=1 // pred_fallthru
      _
    // Predicated region
    $region22: #{tpu_custom_call.1} parent=1 // pred_check
      _
    $region23: #{tpu_custom_call.1} parent=1 // pred_check_branch
      %50 = sbr.rel (0) target = $region25
    $region24: #{tpu_custom_call.1} parent=1 // pred_region
      %51 = dma.done [#allocation6], 128
    $region25: #{tpu_custom_call.1} parent=1 // pred_fallthru
      _
    // Predicated region
    $region26: #{tpu_custom_call.1} parent=1 // pred_check
      _
    $region27: #{tpu_custom_call.1} parent=1 // pred_check_branch
      %53 = sbr.rel (0) target = $region29
    $region28: #{tpu_custom_call.1} parent=1 // pred_region
      %54 = dma.done [#allocation6], 256
    $region29: #{tpu_custom_call.1} parent=1 // pred_fallthru
      _
    %v55 = vld [vmem:[#allocation2] sm:$0xff]
    %v56 = vld [vmem:[#allocation7] sm:$0xff]
    %v57 = vld [vmem:[#allocation7 + $0x8] sm:$0xff]
    %v58 = vld [vmem:[%s3] sm:$0x1]
    %v59 = vld [vmem:[#allocation5] sm:$0xff]
    %v61 = vlaneseq
    %v62 = vshrl.u32 %v61, 7
    %v63 = vsub.s32 0, %v62
    %v64 = vrot.slane %v58, %v63
    %vm66 = vcmask 64512
    %v68 = vsel %vm66, %v55, 0
    %70 = vmatprep.subr.mxu0 0.0
    %71 = vmatpush1.msra.mxu0 0.0
    %72 = vmatprep.subr.mxu0 0.0
    %73 = vmatpush1.msra.mxu0 0.0
    %74 = vmatprep.subr.mxu0 0.0
    %75 = vmatpush1.msra.mxu0 0.0
    %76 = vmatprep.subr.mxu0 0.0
    %77 = vmatpush1.msra.mxu0 0.0
    %78 = vmatprep.subr.mxu0 0.0
    %79 = vmatpush1.msra.mxu0 0.0
    %80 = vmatprep.subr.mxu0 0.0
    %81 = vmatpush1.msra.mxu0 0.0
    %82 = vmatprep.subr.mxu0 0.0
    %83 = vmatpush1.msra.mxu0 0.0
    %84 = vmatprep.subr.mxu0 0.0
    %85 = vmatpush1.msra.mxu0 0.0
    %86 = vmatprep.subr.mxu0 0.0
    %87 = vmatpush1.msra.mxu0 0.0
    %88 = vmatprep.subr.mxu0 0.0
    %89 = vmatpush1.msra.mxu0 0.0
    %90 = vmatprep.subr.mxu0 0.0
    %91 = vmatpush1.msra.mxu0 0.0
    %92 = vmatprep.subr.mxu0 0.0
    %93 = vmatpush1.msra.mxu0 0.0
    %94 = vmatprep.subr.mxu0 0.0
    %95 = vmatpush1.msra.mxu0 0.0
    %96 = vmatprep.subr.mxu0 0.0
    %97 = vmatpush1.msra.mxu0 0.0
    %98 = vmatprep.subr.mxu0 0.0
    %99 = vmatpush1.msra.mxu0 0.0
    %100 = vmatprep.subr.mxu0 0.0
    %101 = vmatpush1.msra.mxu0 %v59
    %102 = vmatprep.subr.mxu0 0.0
    %103 = vmatpush2.msra.mxu0 0.0
    %104 = vmatprep.subr.mxu0 0.0
    %105 = vmatpush2.msra.mxu0 0.0
    %106 = vmatprep.subr.mxu0 0.0
    %107 = vmatpush2.msra.mxu0 0.0
    %108 = vmatprep.subr.mxu0 0.0
    %109 = vmatpush2.msra.mxu0 0.0
    %110 = vmatprep.subr.mxu0 0.0
    %111 = vmatpush2.msra.mxu0 0.0
    %112 = vmatprep.subr.mxu0 0.0
    %113 = vmatpush2.msra.mxu0 0.0
    %114 = vmatprep.subr.mxu0 0.0
    %115 = vmatpush2.msra.mxu0 0.0
    %116 = vmatprep.subr.mxu0 0.0
    %117 = vmatpush2.msra.mxu0 0.0
    %118 = vmatprep.subr.mxu0 0.0
    %119 = vmatpush2.msra.mxu0 0.0
    %120 = vmatprep.subr.mxu0 0.0
    %121 = vmatpush2.msra.mxu0 0.0
    %122 = vmatprep.subr.mxu0 0.0
    %123 = vmatpush2.msra.mxu0 0.0
    %124 = vmatprep.subr.mxu0 0.0
    %125 = vmatpush2.msra.mxu0 0.0
    %126 = vmatprep.subr.mxu0 0.0
    %127 = vmatpush2.msra.mxu0 0.0
    %128 = vmatprep.subr.mxu0 0.0
    %129 = vmatpush2.msra.mxu0 0.0
    %130 = vmatprep.subr.mxu0 0.0
    %131 = vmatpush2.msra.mxu0 0.0
    %132 = vmatprep.subr.mxu0 0.0
    %133 = vmatpush2.msra.mxu0 0.0
    %134 = vmatprep.mubr.f32.mxu0 0.0
    %135 = vmatmul.mubr.f32.gmra.mxu0 %v68
    %v136 = vpop.f32.mrf.mxu0
    %v137 = vadd.f32 %v64, %v136
    %v138 = vpop.f32.mrf.mxu0
    %139 = vdwg.mxu0
    %v140 = vmax.f32 %v137, 0.0
    %141 = vrot.lane.b32.xlu0 %v64, 112
    %v142 = vpop.permute.xlu0 %141
    %vm144 = vcmask 130048
    %v146 = vsel %vm144, %v140, 0
    %148 = vmatprep.subr.mxu0 0.0
    %149 = vmatpush1.msra.mxu0 0.0
    %150 = vmatprep.subr.mxu0 0.0
    %151 = vmatpush1.msra.mxu0 0.0
    %152 = vmatprep.subr.mxu0 0.0
    %153 = vmatpush1.msra.mxu0 0.0
    %154 = vmatprep.subr.mxu0 0.0
    %155 = vmatpush1.msra.mxu0 0.0
    %156 = vmatprep.subr.mxu0 0.0
    %157 = vmatpush1.msra.mxu0 0.0
    %158 = vmatprep.subr.mxu0 0.0
    %159 = vmatpush1.msra.mxu0 0.0
    %160 = vmatprep.subr.mxu0 0.0
    %161 = vmatpush1.msra.mxu0 0.0
    %162 = vmatprep.subr.mxu0 0.0
    %163 = vmatpush1.msra.mxu0 0.0
    %164 = vmatprep.subr.mxu0 0.0
    %165 = vmatpush1.msra.mxu0 0.0
    %166 = vmatprep.subr.mxu0 0.0
    %167 = vmatpush1.msra.mxu0 0.0
    %168 = vmatprep.subr.mxu0 0.0
    %169 = vmatpush1.msra.mxu0 0.0
    %170 = vmatprep.subr.mxu0 0.0
    %171 = vmatpush1.msra.mxu0 0.0
    %172 = vmatprep.subr.mxu0 0.0
    %173 = vmatpush1.msra.mxu0 0.0
    %174 = vmatprep.subr.mxu0 0.0
    %175 = vmatpush1.msra.mxu0 0.0
    %176 = vmatprep.subr.mxu0 0.0
    %177 = vmatpush1.msra.mxu0 %v57
    %178 = vmatprep.subr.mxu0 0.0
    %179 = vmatpush1.msra.mxu0 %v56
    %180 = vmatprep.subr.mxu0 0.0
    %181 = vmatpush2.msra.mxu0 0.0
    %182 = vmatprep.subr.mxu0 0.0
    %183 = vmatpush2.msra.mxu0 0.0
    %184 = vmatprep.subr.mxu0 0.0
    %185 = vmatpush2.msra.mxu0 0.0
    %186 = vmatprep.subr.mxu0 0.0
    %187 = vmatpush2.msra.mxu0 0.0
    %188 = vmatprep.subr.mxu0 0.0
    %189 = vmatpush2.msra.mxu0 0.0
    %190 = vmatprep.subr.mxu0 0.0
    %191 = vmatpush2.msra.mxu0 0.0
    %192 = vmatprep.subr.mxu0 0.0
    %193 = vmatpush2.msra.mxu0 0.0
    %194 = vmatprep.subr.mxu0 0.0
    %195 = vmatpush2.msra.mxu0 0.0
    %196 = vmatprep.subr.mxu0 0.0
    %197 = vmatpush2.msra.mxu0 0.0
    %198 = vmatprep.subr.mxu0 0.0
    %199 = vmatpush2.msra.mxu0 0.0
    %200 = vmatprep.subr.mxu0 0.0
    %201 = vmatpush2.msra.mxu0 0.0
    %202 = vmatprep.subr.mxu0 0.0
    %203 = vmatpush2.msra.mxu0 0.0
    %204 = vmatprep.subr.mxu0 0.0
    %205 = vmatpush2.msra.mxu0 0.0
    %206 = vmatprep.subr.mxu0 0.0
    %207 = vmatpush2.msra.mxu0 0.0
    %208 = vmatprep.subr.mxu0 0.0
    %209 = vmatpush2.msra.mxu0 0.0
    %210 = vmatprep.subr.mxu0 0.0
    %211 = vmatpush2.msra.mxu0 0.0
    %212 = vmatprep.mubr.f32.mxu0 0.0
    %213 = vmatmul.mubr.f32.gmra.mxu0 %v146
    %v214 = vpop.f32.mrf.mxu0
    %v215 = vadd.f32 %v142, %v214
    %v216 = vpop.f32.mrf.mxu0
    %217 = vdwg.mxu0
    %v218 = vmax.f32 %v215, 0.0
    %221 = vrot.lane.b32.xlu0 %v56, 112
    %v222 = vpop.permute.xlu0 %221
    %223 = vrot.lane.b32.xlu0 %v57, 112
    %v224 = vpop.permute.xlu0 %223
    %227 = vrot.lane.b32.xlu0 %v64, 96
    %v228 = vpop.permute.xlu0 %227
    %v231 = vsel %vm144, %v218, 0
    %233 = vmatprep.subr.mxu0 0.0
    %234 = vmatpush1.msra.mxu0 0.0
    %235 = vmatprep.subr.mxu0 0.0
    %236 = vmatpush1.msra.mxu0 0.0
    %237 = vmatprep.subr.mxu0 0.0
    %238 = vmatpush1.msra.mxu0 0.0
    %239 = vmatprep.subr.mxu0 0.0
    %240 = vmatpush1.msra.mxu0 0.0
    %241 = vmatprep.subr.mxu0 0.0
    %242 = vmatpush1.msra.mxu0 0.0
    %243 = vmatprep.subr.mxu0 0.0
    %244 = vmatpush1.msra.mxu0 0.0
    %245 = vmatprep.subr.mxu0 0.0
    %246 = vmatpush1.msra.mxu0 0.0
    %247 = vmatprep.subr.mxu0 0.0
    %248 = vmatpush1.msra.mxu0 0.0
    %249 = vmatprep.subr.mxu0 0.0
    %250 = vmatpush1.msra.mxu0 0.0
    %251 = vmatprep.subr.mxu0 0.0
    %252 = vmatpush1.msra.mxu0 0.0
    %253 = vmatprep.subr.mxu0 0.0
    %254 = vmatpush1.msra.mxu0 0.0
    %255 = vmatprep.subr.mxu0 0.0
    %256 = vmatpush1.msra.mxu0 0.0
    %257 = vmatprep.subr.mxu0 0.0
    %258 = vmatpush1.msra.mxu0 0.0
    %259 = vmatprep.subr.mxu0 0.0
    %260 = vmatpush1.msra.mxu0 0.0
    %261 = vmatprep.subr.mxu0 0.0
    %262 = vmatpush1.msra.mxu0 %v224
    %263 = vmatprep.subr.mxu0 0.0
    %264 = vmatpush1.msra.mxu0 %v222
    %265 = vmatprep.subr.mxu0 0.0
    %266 = vmatpush2.msra.mxu0 0.0
    %267 = vmatprep.subr.mxu0 0.0
    %268 = vmatpush2.msra.mxu0 0.0
    %269 = vmatprep.subr.mxu0 0.0
    %270 = vmatpush2.msra.mxu0 0.0
    %271 = vmatprep.subr.mxu0 0.0
    %272 = vmatpush2.msra.mxu0 0.0
    %273 = vmatprep.subr.mxu0 0.0
    %274 = vmatpush2.msra.mxu0 0.0
    %275 = vmatprep.subr.mxu0 0.0
    %276 = vmatpush2.msra.mxu0 0.0
    %277 = vmatprep.subr.mxu0 0.0
    %278 = vmatpush2.msra.mxu0 0.0
    %279 = vmatprep.subr.mxu0 0.0
    %280 = vmatpush2.msra.mxu0 0.0
    %281 = vmatprep.subr.mxu0 0.0
    %282 = vmatpush2.msra.mxu0 0.0
    %283 = vmatprep.subr.mxu0 0.0
    %284 = vmatpush2.msra.mxu0 0.0
    %285 = vmatprep.subr.mxu0 0.0
    %286 = vmatpush2.msra.mxu0 0.0
    %287 = vmatprep.subr.mxu0 0.0
    %288 = vmatpush2.msra.mxu0 0.0
    %289 = vmatprep.subr.mxu0 0.0
    %290 = vmatpush2.msra.mxu0 0.0
    %291 = vmatprep.subr.mxu0 0.0
    %292 = vmatpush2.msra.mxu0 0.0
    %293 = vmatprep.subr.mxu0 0.0
    %294 = vmatpush2.msra.mxu0 0.0
    %295 = vmatprep.subr.mxu0 0.0
    %296 = vmatpush2.msra.mxu0 0.0
    %297 = vmatprep.mubr.f32.mxu0 0.0
    %298 = vmatmul.mubr.f32.gmra.mxu0 %v231
    %v299 = vpop.f32.mrf.mxu0
    %v300 = vadd.f32 %v228, %v299
    %v301 = vpop.f32.mrf.mxu0
    %302 = vdwg.mxu0
    %v303 = vmax.f32 %v300, 0.0
    %vm304 = vcmp.ne.f32.partialorder %v300, %v300
    %v305 = vadd.f32 %v300, 0.0
    %v306 = vand.u32 2147483647, %v300
    %v307 = vsub.f32 0.0, %v306
    %v308 = vmul.f32 %v307, 1.442695
    %v309 = vpow.pop %v308
    %v310 = vadd.f32 %v309, 1.0
    %v311 = vlog2.pop %v310
    %v312 = vmul.f32 %v311, 0.6931472
    %v313 = vmul.f32 -0.5, %v309
    %v314 = vadd.f32 %v313, 1.0
    %v315 = vmul.f32 %v314, %v309
    %v316 = vand.u32 2147483647, %v309
    %vm317 = vcmp.lt.f32.partialorder %v316, 0.0004427343
    %v318 = vsel %vm317, %v315, %v312
    %v319 = vadd.f32 %v303, %v318
    %v320 = vsel %vm304, %v305, %v319
    %v321 = vlog2.pop %v320
    %v322 = vmul.f32 %v321, 0.6931472
    %323 = vrot.lane.b32.xlu0 %v55, 124
    %v324 = vpop.permute.xlu0 %323
    %v326 = vmul.f32 %v320, %v324
    %328 = vrot.lane.b32.xlu0 %v326, 124
    %v329 = vpop.permute.xlu0 %328
    %v331 = vadd.f32 %v300, %v329
    %v332 = vadd.f32 %v322, 1.4189385
    %v333 = vmul.f32 %v55, -0.5
    %v334 = vmul.f32 %v333, %v55
    %336 = vrot.lane.b32.xlu0 %v322, 4
    %v337 = vpop.permute.xlu0 %336
    %v339 = vsub.f32 %v334, %v337
    %v340 = vsub.f32 %v339, 0.9189385
    %v341 = vtanh.pop %v331
    %v342 = vmul.f32 %v341, 2.0
    %v343 = vmul.f32 %v341, %v341
    %v344 = vsub.f32 1.0, %v343
    %v345 = vmul.f32 %v344, 2.0
    %v346 = vadd.f32 %v345, 1e-06
    %v347 = vlog2.pop %v346
    %v348 = vmul.f32 %v347, 0.6931472
    %350 = vrot.lane.b32.xlu0 %v348, 8
    %v351 = vpop.permute.xlu0 %350
    %v353 = vsub.f32 %v340, %v351
    %355 = vrot.lane.b32.xlu0 %v353, 120
    %v356 = vpop.permute.xlu0 %355
    %vm358 = vcmask 31744
    %v359 = vsel %vm358, %v356, 0.0
    %360 = vadd.xlane.f32.xlu0 %v359
    %v361 = vpop.xlane.xlu0 %360
    %v362 = vsel %vm358, %v342, %v332
    %v363 = vsel %vm66, %v362, %v361
    %vm364 = vcmask 72704
    %365 = vst.msk [vmem:[#allocation8] sm:$0xff] %vm364, %v363
    // Predicated region
    $region30: #{tpu_custom_call.1} parent=1 // pred_check
      _
    $region31: #{tpu_custom_call.1} parent=1 // pred_check_branch
      %367 = sbr.rel (0) target = $region33
    $region32: #{tpu_custom_call.1} parent=1 // pred_region
      %s369 = ssub.s32 128, 128
      %370 = vsyncadd [#allocation4], %s369
      %s372 = sshll.u32 [#allocation8], 4
      %s373 = int_to_ptr.vmem [resolvable:$true] %s372
      %375 = dma.vmem_to_hbm [thread:$0]  %s373, 128, %s4, [#allocation4]
    $region33: #{tpu_custom_call.1} parent=1 // pred_fallthru
      _
    // Predicated region
    $region34: #{tpu_custom_call.1} parent=1 // pred_check
      _
    $region35: #{tpu_custom_call.1} parent=1 // pred_check_branch
      %377 = sbr.rel (0) target = $region37
    $region36: #{tpu_custom_call.1} parent=1 // pred_region
      %378 = dma.done [#allocation4], 128
    $region37: #{tpu_custom_call.1} parent=1 // pred_fallthru
      _
    %379 = vsyncpa [#allocation3], 1
    %380 = vsyncpa [#allocation6], 1
    %381 = vsyncpa [#allocation4], 1

</llo_original>
